<compile_context>
chip_gen: v6e
topology: v6e:2x2x1
jax: 0.10.0
libtpu: 0.0.40
codegen_flags: <defaults>
</compile_context>

<pallas_src>
import functools

import jax
import jax.numpy as jnp
from jax.experimental import pallas as pl
from jax.experimental.pallas import tpu as pltpu


def _splade_kernel(x_ref, w_ref, b_ref, m_ref, o_ref, *, agg, seq):
    # x_ref: (tm, H)   bf16  activations for bpt = tm // seq whole sequences
    # w_ref: (H, tv)   bf16  vocab tile of the MLM-head weight (streamed)
    # b_ref: (1, tv)   f32   vocab tile of the MLM-head bias
    # m_ref: (tm, 1)   f32   attention-mask rows (binary {0,1})
    # o_ref: (bpt, tv) f32   SPLADE sparse-vector tile for those sequences
    logits = jnp.dot(x_ref[...], w_ref[...],
                     preferred_element_type=jnp.float32) + b_ref[...]
    relu = jnp.maximum(logits, 0.0)                 # (tm, tv) f32
    m = m_ref[...]                                  # (tm, 1)  f32
    tm, tv = relu.shape
    bpt = tm // seq

    if agg == "max":
        # Binary mask -> plain multiply (cheaper than compare+select).
        # log1p is monotone and relu >= 0, so for m in {0,1}:
        #   max_s( log1p(relu) * m ) == log1p( max_s( relu * m ) )
        # i.e. bpt*tv transcendentals per tile instead of tm*tv.
        masked = relu * m                           # (tm, tv)
        mx = jnp.max(masked.reshape(bpt, seq, tv), axis=1)   # (bpt, tv)
        o_ref[...] = jnp.log1p(mx)
    else:  # 'sum' -- exact form (also correct for non-binary masks)
        # TODO(synk): if EUP-bound at production tiles, feed log1p a bf16 value.
        act = jnp.log1p(relu) * m                   # (tm, tv)
        o_ref[...] = jnp.sum(act.reshape(bpt, seq, tv), axis=1)


def prepare_splade_head(w, b, *, tv=512):
    """One-time (model-init) prep of the MLM-head weights.

    Pads the vocab axis to a multiple of the vocab tile (padded columns get a
    very negative bias so relu -> 0 and they contribute nothing), and casts
    the streamed weight to bf16.  Doing this per forward call would re-stream
    H*V*6 bytes of HBM traffic for zero benefit.
    """
    H, V = w.shape
    Vp = pl.cdiv(V, tv) * tv
    if Vp != V:
        w = jnp.pad(w, ((0, 0), (0, Vp - V)))
        b = jnp.pad(b, (0, Vp - V), constant_values=-1e9)
    return w.astype(jnp.bfloat16), b.reshape(1, Vp).astype(jnp.float32), V


def splade_forward(x, attention_mask, w_bf16, bias_f32, vocab_size, *,
                   agg="max", tv=512, target_rows=512,
                   vmem_limit_bytes=32 * 1024 * 1024):
    """x: (B,S,H) f32, attention_mask: (B,S) {0,1}, prepared W/bias -> (B,V)."""
    assert agg in ("sum", "max")
    B, S, H = x.shape
    Hw, Vp = w_bf16.shape
    assert Hw == H and Vp % tv == 0

    # Whole-sequence row tiles: bpt sequences (tm = bpt*S rows) per grid step.
    bpt = min(B, max(1, target_rows // S))
    if bpt < B and bpt % 8 != 0:
        # Multiple batch tiles: keep the output sublane dim 8-aligned.
        bpt = min(B, ((bpt + 7) // 8) * 8)
    Bp = pl.cdiv(B, bpt) * bpt
    tm = bpt * S

    if Bp != B:
        # Padded sequences get a zero mask -> contribute nothing; sliced off below.
        x = jnp.pad(x, ((0, Bp - B), (0, 0), (0, 0)))
        attention_mask = jnp.pad(attention_mask, ((0, Bp - B), (0, 0)))

    x_flat = x.reshape(Bp * S, H).astype(jnp.bfloat16)
    mask = attention_mask.astype(jnp.float32).reshape(Bp * S, 1)

    n_v = Vp // tv
    n_b = Bp // bpt
    kernel = functools.partial(_splade_kernel, agg=agg, seq=S)

    flops = 2 * Bp * S * H * Vp
    transcendentals = Bp * Vp if agg == "max" else Bp * S * Vp
    bytes_accessed = (Bp * S * H * 2 * n_v   # x (bf16), re-streamed per vocab tile
                      + H * Vp * 2           # W (bf16), streamed once
                      + Vp * 4               # bias
                      + Bp * S * 4 * n_v     # mask
                      + Bp * Vp * 4)         # output

    out = pl.pallas_call(
        kernel,
        out_shape=jax.ShapeDtypeStruct((Bp, Vp), jnp.float32),
        grid_spec=pltpu.PrefetchScalarGridSpec(
            num_scalar_prefetch=0,
            # Vocab axis first ("parallel", shards across v7x TensorCores);
            # row-tile axis last.  Each step writes a disjoint output block.
            grid=(n_v, n_b),
            in_specs=[
                pl.BlockSpec((tm, H), lambda j, b: (b, 0)),   # x row tile
                pl.BlockSpec((H, tv), lambda j, b: (0, j)),   # W vocab tile
                pl.BlockSpec((1, tv), lambda j, b: (0, j)),   # bias tile
                pl.BlockSpec((tm, 1), lambda j, b: (b, 0)),   # mask row tile
            ],
            out_specs=pl.BlockSpec((bpt, tv), lambda j, b: (b, j)),
        ),
        compiler_params=pltpu.CompilerParams(
            dimension_semantics=("parallel", "arbitrary"),
            vmem_limit_bytes=vmem_limit_bytes,
        ),
        cost_estimate=pl.CostEstimate(
            flops=flops,
            transcendentals=transcendentals,
            bytes_accessed=bytes_accessed,
        ),
    )(x_flat, w_bf16, bias_f32, mask)
    return out[:B, :vocab_size]


def splade_reference(x, w, b, attention_mask, *, agg="max"):
    logits = jnp.einsum("bsh,hv->bsv", x, w) + b[None, None, :]
    act = jnp.log1p(jnp.maximum(logits, 0.0)) * attention_mask.astype(
        jnp.float32)[..., None]
    if agg == "max":
        return jnp.max(act, axis=1)
    return jnp.sum(act, axis=1)


if __name__ == "__main__":
    # Small, deterministic shapes consistent with the forward pass:
    # batch=2, seq=8, hidden=32, vocab=512.
    B, S, H, V = 2, 8, 32, 512

    key = jax.random.PRNGKey(0)
    kx, kw, kb, km = jax.random.split(key, 4)

    x = jax.random.normal(kx, (B, S, H), dtype=jnp.float32)
    w = jax.random.normal(kw, (H, V), dtype=jnp.float32) * 0.1
    b = jax.random.normal(kb, (V,), dtype=jnp.float32) * 0.1
    # attention mask: first batch fully attended, second has padding at the end
    attention_mask = jnp.array(
        [[1, 1, 1, 1, 1, 1, 1, 1],
         [1, 1, 1, 1, 1, 0, 0, 0]], dtype=jnp.int32)

    # One-time weight prep ("model init"): vocab pad + bf16 cast hoisted out
    # of the per-call forward path.
    w_bf16, bias_f32, vocab_size = prepare_splade_head(w, b, tv=512)

    ok = True
    for agg in ("max", "sum"):
        out = splade_forward(x, attention_mask, w_bf16, bias_f32, vocab_size,
                             agg=agg)
        out = jax.block_until_ready(out)
        ref = splade_reference(x, w, b, attention_mask, agg=agg)
        assert out.shape == (B, V)
        # bf16 inputs -> loosened tolerance vs the f32 reference.
        ok = ok and bool(jnp.allclose(out, ref, rtol=5e-2, atol=5e-2))

    assert ok, "mismatch vs reference"
    print("KERNEL_OK")
</pallas_src>

<mosaic_0001>
module attributes {stable_mosaic.version = 11 : i64} {
  func.func @_splade_kernel(%arg0: i32, %arg1: i32, %arg2: memref<16x32xbf16, #tpu.memory_space<vmem>>, %arg3: memref<32x512xbf16, #tpu.memory_space<vmem>>, %arg4: memref<1x512xf32, #tpu.memory_space<vmem>>, %arg5: memref<16x1xf32, #tpu.memory_space<vmem>>, %arg6: memref<2x512xf32, #tpu.memory_space<vmem>>) attributes {dimension_semantics = [#tpu.dimension_semantics<parallel>, #tpu.dimension_semantics<arbitrary>], iteration_bounds = array<i64: 1, 1>, scalar_prefetch = 0 : i64, scratch_operands = 0 : i64, tpu.core_type = #tpu.core_type<tc>, window_params = [{transform_indices = @transform_0, window_bounds = array<i64: 16, 32>}, {transform_indices = @transform_1, window_bounds = array<i64: 32, 512>}, {transform_indices = @transform_2, window_bounds = array<i64: 1, 512>}, {transform_indices = @transform_3, window_bounds = array<i64: 16, 1>}, {transform_indices = @transform_4, window_bounds = array<i64: 2, 512>}]} {
    %c0 = arith.constant 0 : index
    %c0_0 = arith.constant 0 : index
    %0 = vector.load %arg2[%c0, %c0_0] : memref<16x32xbf16, #tpu.memory_space<vmem>>, vector<16x32xbf16>
    %c0_1 = arith.constant 0 : index
    %c0_2 = arith.constant 0 : index
    %1 = vector.load %arg3[%c0_1, %c0_2] : memref<32x512xbf16, #tpu.memory_space<vmem>>, vector<32x512xbf16>
    %cst = arith.constant dense<0.000000e+00> : vector<16x512xf32>
    %2 = tpu.matmul %0, %1, %cst {dimension_numbers = #tpu.dot_dimension_numbers<[1], [0], [0], [1], [0, 0, 1, 1], [], []>} : vector<16x32xbf16>, vector<32x512xbf16>, vector<16x512xf32> -> vector<16x512xf32>
    %c0_3 = arith.constant 0 : index
    %c0_4 = arith.constant 0 : index
    %3 = vector.load %arg4[%c0_3, %c0_4] : memref<1x512xf32, #tpu.memory_space<vmem>>, vector<1x512xf32>
    %4 = vector.broadcast %3 : vector<1x512xf32> to vector<16x512xf32>
    %5 = arith.addf %2, %4 : vector<16x512xf32>
    %cst_5 = arith.constant 0.000000e+00 : f32
    %6 = vector.broadcast %cst_5 : f32 to vector<16x512xf32>
    %7 = arith.maximumf %5, %6 : vector<16x512xf32>
    %c0_6 = arith.constant 0 : index
    %c0_7 = arith.constant 0 : index
    %8 = vector.load %arg5[%c0_6, %c0_7] : memref<16x1xf32, #tpu.memory_space<vmem>>, vector<16x1xf32>
    %9 = vector.broadcast %8 : vector<16x1xf32> to vector<16x512xf32>
    %10 = arith.mulf %7, %9 : vector<16x512xf32>
    %11 = vector.shape_cast %10 : vector<16x512xf32> to vector<2x8x512xf32>
    %cst_8 = arith.constant dense<0xFF800000> : vector<2x512xf32>
    %12 = vector.multi_reduction <maximumf>, %11, %cst_8 [1] : vector<2x8x512xf32> to vector<2x512xf32>
    %13 = math.log1p %12 : vector<2x512xf32>
    %c0_9 = arith.constant 0 : index
    %c0_10 = arith.constant 0 : index
    %14 = vector.load %arg6[%c0_9, %c0_10] : memref<2x512xf32, #tpu.memory_space<vmem>>, vector<2x512xf32>
    tpu.vector_store %arg6[%c0_9, %c0_10], %13 {strides = array<i32>} : memref<2x512xf32, #tpu.memory_space<vmem>>, vector<2x512xf32>,
    return
  }
  func.func @transform_0(%arg0: i32, %arg1: i32) -> (i32, i32) {
    %c0_i32 = arith.constant 0 : i32
    %c0_i32_0 = arith.constant 0 : i32
    return %arg1, %c0_i32 : i32, i32
  }
  func.func @transform_1(%arg0: i32, %arg1: i32) -> (i32, i32) {
    %c0_i32 = arith.constant 0 : i32
    %c0_i32_0 = arith.constant 0 : i32
    return %c0_i32, %arg0 : i32, i32
  }
  func.func @transform_2(%arg0: i32, %arg1: i32) -> (i32, i32) {
    %c0_i32 = arith.constant 0 : i32
    %c0_i32_0 = arith.constant 0 : i32
    return %c0_i32, %arg0 : i32, i32
  }
  func.func @transform_3(%arg0: i32, %arg1: i32) -> (i32, i32) {
    %c0_i32 = arith.constant 0 : i32
    %c0_i32_0 = arith.constant 0 : i32
    return %arg1, %c0_i32 : i32, i32
  }
  func.func @transform_4(%arg0: i32, %arg1: i32) -> (i32, i32) {
    %c0_i32 = arith.constant 0 : i32
    return %arg1, %arg0 : i32, i32
  }
}

</mosaic_0001>

<llo_original>
// kernel: tpu_custom_call.1
$region0: #{tpu_custom_call.1}
  #allocation0 [shape = 'u32[]', space=smem, size = 0x4, offset = 0x4, fixed_abs, tag = 'smem constant byte address 0x4 - core index']
  #allocation1 [shape = 'u32[144,128]{1,0:T(1,128)}', space=vmem, size = 0x12000, scoped, tag = 'internal scratch']
  %s0 = inlined_call_operand.vmem [shape: bf16[16,32], index: 0, kind: input, shape index: {}]
  %s1 = inlined_call_operand.hbm [shape: bf16[32,512], index: 1, kind: input, shape index: {}]
  %s2 = inlined_call_operand.vmem [shape: f32[1,512], index: 2, kind: input, shape index: {}]
  %s3 = inlined_call_operand.vmem [shape: f32[16,1], index: 3, kind: input, shape index: {}]
  %s4 = inlined_call_operand.hbm [shape: f32[2,512], index: 4, kind: output, shape index: {}]
  %s5 = sld [smem:[#allocation0]]
  $region30: #{tpu_custom_call.1} parent=0
    _
  %s7 = ssub.s32 1, %s5
  %s8 = scalar_select 0, %s7, %s5
  $region1: #{tpu_custom_call.1} parent=0
    #allocation2 [shape = 'u8[32768]{0}', space=vmem, size = 0x8000, scoped, tag = 'input window, operand 1, single buffered']
    #allocation3 [shape = 's32[1]{0}', space=sflag, size = 0x4, scoped, tag = 'scoped memory for tpu_custom_call.1']
    #allocation4 [shape = 's32[1]{0}', space=sflag, size = 0x4, scoped, tag = 'scoped memory for tpu_custom_call.1']
    #allocation5 [shape = 'u8[4096]{0}', space=vmem, size = 0x1000, scoped, tag = 'output window, operand 0, single buffered']
    %9 = vsyncpa [#allocation3], 0
    %10 = vsyncpa [#allocation4], 0
    // Predicated region
    $region2: #{tpu_custom_call.1} parent=1 // pred_check
      _
    $region3: #{tpu_custom_call.1} parent=1 // pred_check_branch
      %12 = sbr.rel (0) target = $region5
    $region4: #{tpu_custom_call.1} parent=1 // pred_region
      _
    $region5: #{tpu_custom_call.1} parent=1 // pred_fallthru
      _
    // Predicated region
    $region6: #{tpu_custom_call.1} parent=1 // pred_check
      _
    $region7: #{tpu_custom_call.1} parent=1 // pred_check_branch
      %14 = sbr.rel (0) target = $region9
    $region8: #{tpu_custom_call.1} parent=1 // pred_region
      %s16 = ssub.s32 1024, 1024
      %17 = vsyncadd [#allocation3], %s16
      %s18 = sshll.u32 [#allocation2], 4
      %s19 = int_to_ptr.vmem [resolvable:$true] %s18
      %24 = dma.hbm_to_vmem [thread:$0]  %s1, 1024, %s19, [#allocation3], 256, 256, 16
    $region9: #{tpu_custom_call.1} parent=1 // pred_fallthru
      _
    // Predicated region
    $region10: #{tpu_custom_call.1} parent=1 // pred_check
      _
    $region11: #{tpu_custom_call.1} parent=1 // pred_check_branch
      %26 = sbr.rel (0) target = $region13
    $region12: #{tpu_custom_call.1} parent=1 // pred_region
      _
    $region13: #{tpu_custom_call.1} parent=1 // pred_fallthru
      _
    // Predicated region
    $region14: #{tpu_custom_call.1} parent=1 // pred_check
      _
    $region15: #{tpu_custom_call.1} parent=1 // pred_check_branch
      %28 = sbr.rel (0) target = $region17
    $region16: #{tpu_custom_call.1} parent=1 // pred_region
      _
    $region17: #{tpu_custom_call.1} parent=1 // pred_fallthru
      _
    // Predicated region
    $region18: #{tpu_custom_call.1} parent=1 // pred_check
      _
    $region19: #{tpu_custom_call.1} parent=1 // pred_check_branch
      %30 = sbr.rel (0) target = $region21
    $region20: #{tpu_custom_call.1} parent=1 // pred_region
      %31 = dma.done [#allocation3], 1024
    $region21: #{tpu_custom_call.1} parent=1 // pred_fallthru
      _
    %v33 = vld [vmem:[%s0] sm:$0xf]
    %v34 = vld [vmem:[%s0 + $0x4] sm:$0xf]
    %v35 = vld [vmem:[#allocation2] sm:$0xff]
    %v36 = vld [vmem:[#allocation2 + $0x8] sm:$0xff]
    %v37 = vld [vmem:[#allocation2 + $0x10] sm:$0xff]
    %v38 = vld [vmem:[#allocation2 + $0x18] sm:$0xff]
    %v39 = vld [vmem:[#allocation2 + $0x20] sm:$0xff]
    %v40 = vld [vmem:[#allocation2 + $0x28] sm:$0xff]
    %v41 = vld [vmem:[#allocation2 + $0x30] sm:$0xff]
    %v42 = vld [vmem:[#allocation2 + $0x38] sm:$0xff]
    %v43 = vld [vmem:[%s2] sm:$0xf]
    %v45 = vlaneseq
    %v46 = vshrl.u32 %v45, 7
    %v47 = vsub.s32 0, %v46
    %v48 = vrot.slane %v43, %v47
    %v49 = vlaneseq
    %v50 = vshrl.u32 %v49, 7
    %v51 = vsub.s32 1, %v50
    %v52 = vrot.slane %v43, %v51
    %v53 = vlaneseq
    %v54 = vshrl.u32 %v53, 7
    %v55 = vsub.s32 2, %v54
    %v56 = vrot.slane %v43, %v55
    %v57 = vlaneseq
    %v58 = vshrl.u32 %v57, 7
    %v59 = vsub.s32 3, %v58
    %v60 = vrot.slane %v43, %v59
    %v67 = vunpack.c.l.b16 %v33
    %v68 = vunpack.c.l.b16 %v34
    %v69 = vpack.c.b16 %v68, %v67
    %v78 = vunpack.c.l.b16 %v35
    %v79 = vunpack.c.h.b16 %v35
    %v80 = vunpack.c.l.b16 %v36
    %v81 = vunpack.c.h.b16 %v36
    %v82 = vunpack.c.l.b16 %v37
    %v83 = vunpack.c.h.b16 %v37
    %v84 = vunpack.c.l.b16 %v38
    %v85 = vunpack.c.h.b16 %v38
    %v86 = vunpack.c.l.b16 %v39
    %v87 = vunpack.c.h.b16 %v39
    %v88 = vunpack.c.l.b16 %v40
    %v89 = vunpack.c.h.b16 %v40
    %v90 = vunpack.c.l.b16 %v41
    %v91 = vunpack.c.h.b16 %v41
    %v92 = vunpack.c.l.b16 %v42
    %v93 = vunpack.c.h.b16 %v42
    %v94 = vpack.c.b16 %v82, %v78
    %v95 = vpack.c.b16 %v83, %v79
    %v96 = vpack.c.b16 %v84, %v80
    %v97 = vpack.c.b16 %v85, %v81
    %v98 = vpack.c.b16 %v90, %v86
    %v99 = vpack.c.b16 %v91, %v87
    %v100 = vpack.c.b16 %v92, %v88
    %v101 = vpack.c.b16 %v93, %v89
    %vm110 = vcmask 261120
    %v112 = vsel %vm110, %v69, 0
    %114 = vmatprep.subr.bf16.mxu0 0
    %115 = vmatpush1.bf16.msra.mxu0 0
    %116 = vmatprep.subr.bf16.mxu0 0
    %117 = vmatpush1.bf16.msra.mxu0 0
    %118 = vmatprep.subr.bf16.mxu0 0
    %119 = vmatpush1.bf16.msra.mxu0 0
    %120 = vmatprep.subr.bf16.mxu0 0
    %121 = vmatpush1.bf16.msra.mxu0 0
    %122 = vmatprep.subr.bf16.mxu0 0
    %123 = vmatpush1.bf16.msra.mxu0 0
    %124 = vmatprep.subr.bf16.mxu0 0
    %125 = vmatpush1.bf16.msra.mxu0 0
    %126 = vmatprep.subr.bf16.mxu0 %v99
    %127 = vmatpush1.bf16.msra.mxu0 %v98
    %128 = vmatprep.subr.bf16.mxu0 %v95
    %129 = vmatpush1.bf16.msra.mxu0 %v94
    %130 = vmatprep.subr.bf16.mxu0 0
    %131 = vmatpush2.bf16.msra.mxu0 0
    %132 = vmatprep.subr.bf16.mxu0 0
    %133 = vmatpush2.bf16.msra.mxu0 0
    %134 = vmatprep.subr.bf16.mxu0 0
    %135 = vmatpush2.bf16.msra.mxu0 0
    %136 = vmatprep.subr.bf16.mxu0 0
    %137 = vmatpush2.bf16.msra.mxu0 0
    %138 = vmatprep.subr.bf16.mxu0 0
    %139 = vmatpush2.bf16.msra.mxu0 0
    %140 = vmatprep.subr.bf16.mxu0 0
    %141 = vmatpush2.bf16.msra.mxu0 0
    %142 = vmatprep.subr.bf16.mxu0 0
    %143 = vmatpush2.bf16.msra.mxu0 0
    %144 = vmatprep.subr.bf16.mxu0 0
    %145 = vmatpush2.bf16.msra.mxu0 0
    %146 = vmatprep.mubr.bf16.mxu0 0
    %147 = vmatmul.mubr.bf16.gmra.mxu0 %v112
    %v148 = vpop.f32.mrf.mxu0
    %v149 = vadd.f32 %v48, %v148
    %v150 = vpop.f32.mrf.mxu0
    %v151 = vadd.f32 %v52, %v150
    %v152 = vpop.f32.mrf.mxu0
    %v153 = vadd.f32 %v48, %v152
    %v154 = vpop.f32.mrf.mxu0
    %v155 = vadd.f32 %v52, %v154
    %156 = vdwg.mxu0
    %157 = vmatprep.subr.bf16.mxu0 0
    %158 = vmatpush1.bf16.msra.mxu0 0
    %159 = vmatprep.subr.bf16.mxu0 0
    %160 = vmatpush1.bf16.msra.mxu0 0
    %161 = vmatprep.subr.bf16.mxu0 0
    %162 = vmatpush1.bf16.msra.mxu0 0
    %163 = vmatprep.subr.bf16.mxu0 0
    %164 = vmatpush1.bf16.msra.mxu0 0
    %165 = vmatprep.subr.bf16.mxu0 0
    %166 = vmatpush1.bf16.msra.mxu0 0
    %167 = vmatprep.subr.bf16.mxu0 0
    %168 = vmatpush1.bf16.msra.mxu0 0
    %169 = vmatprep.subr.bf16.mxu0 %v101
    %170 = vmatpush1.bf16.msra.mxu0 %v100
    %171 = vmatprep.subr.bf16.mxu0 %v97
    %172 = vmatpush1.bf16.msra.mxu0 %v96
    %173 = vmatprep.subr.bf16.mxu0 0
    %174 = vmatpush2.bf16.msra.mxu0 0
    %175 = vmatprep.subr.bf16.mxu0 0
    %176 = vmatpush2.bf16.msra.mxu0 0
    %177 = vmatprep.subr.bf16.mxu0 0
    %178 = vmatpush2.bf16.msra.mxu0 0
    %179 = vmatprep.subr.bf16.mxu0 0
    %180 = vmatpush2.bf16.msra.mxu0 0
    %181 = vmatprep.subr.bf16.mxu0 0
    %182 = vmatpush2.bf16.msra.mxu0 0
    %183 = vmatprep.subr.bf16.mxu0 0
    %184 = vmatpush2.bf16.msra.mxu0 0
    %185 = vmatprep.subr.bf16.mxu0 0
    %186 = vmatpush2.bf16.msra.mxu0 0
    %187 = vmatprep.subr.bf16.mxu0 0
    %188 = vmatpush2.bf16.msra.mxu0 0
    %189 = vmatprep.mubr.bf16.mxu0 0
    %190 = vmatmul.mubr.bf16.gmra.mxu0 %v112
    %v191 = vpop.f32.mrf.mxu0
    %v192 = vadd.f32 %v56, %v191
    %v193 = vpop.f32.mrf.mxu0
    %v194 = vadd.f32 %v60, %v193
    %v195 = vpop.f32.mrf.mxu0
    %v196 = vadd.f32 %v56, %v195
    %v197 = vpop.f32.mrf.mxu0
    %v198 = vadd.f32 %v60, %v197
    %199 = vdwg.mxu0
    %v200 = vmax.f32 %v149, 0.0
    %v201 = vmax.f32 %v151, 0.0
    %v202 = vmax.f32 %v192, 0.0
    %v203 = vmax.f32 %v194, 0.0
    %v204 = vmax.f32 %v153, 0.0
    %v205 = vmax.f32 %v155, 0.0
    %v206 = vmax.f32 %v196, 0.0
    %v207 = vmax.f32 %v198, 0.0
    %v208 = vld [vmem:[%s3] sm:$0xff]
    %v209 = vld [vmem:[%s3 + $0x8] sm:$0xff]
    %211 = vset.pattern.permute.xlu0 0
    %212 = vperm.xlu0 %211, %v208
    %v213 = vpop.permute.xlu0 %212
    %216 = vset.pattern.permute.xlu0 0
    %217 = vperm.xlu0 %216, %v209
    %v218 = vpop.permute.xlu0 %217
    %v220 = vmul.f32 %v200, %v213
    %v221 = vmul.f32 %v201, %v213
    %v222 = vmul.f32 %v202, %v213
    %v223 = vmul.f32 %v203, %v213
    %v224 = vmul.f32 %v204, %v218
    %v225 = vmul.f32 %v205, %v218
    %v226 = vmul.f32 %v206, %v218
    %v227 = vmul.f32 %v207, %v218
    %v228 = vrot.slane %v220, 4
    %v229 = vmax.f32 %v220, %v228
    %v230 = vrot.slane %v229, 2
    %v231 = vmax.f32 %v229, %v230
    %v232 = vrot.slane %v231, 1
    %v233 = vmax.f32 %v231, %v232
    %v234 = vrot.slane %v221, 4
    %v235 = vmax.f32 %v221, %v234
    %v236 = vrot.slane %v235, 2
    %v237 = vmax.f32 %v235, %v236
    %v238 = vrot.slane %v237, 1
    %v239 = vmax.f32 %v237, %v238
    %v240 = vrot.slane %v222, 4
    %v241 = vmax.f32 %v222, %v240
    %v242 = vrot.slane %v241, 2
    %v243 = vmax.f32 %v241, %v242
    %v244 = vrot.slane %v243, 1
    %v245 = vmax.f32 %v243, %v244
    %v246 = vrot.slane %v223, 4
    %v247 = vmax.f32 %v223, %v246
    %v248 = vrot.slane %v247, 2
    %v249 = vmax.f32 %v247, %v248
    %v250 = vrot.slane %v249, 1
    %v251 = vmax.f32 %v249, %v250
    %v252 = vrot.slane %v224, 4
    %v253 = vmax.f32 %v224, %v252
    %v254 = vrot.slane %v253, 2
    %v255 = vmax.f32 %v253, %v254
    %v256 = vrot.slane %v255, 1
    %v257 = vmax.f32 %v255, %v256
    %v258 = vrot.slane %v225, 4
    %v259 = vmax.f32 %v225, %v258
    %v260 = vrot.slane %v259, 2
    %v261 = vmax.f32 %v259, %v260
    %v262 = vrot.slane %v261, 1
    %v263 = vmax.f32 %v261, %v262
    %v264 = vrot.slane %v226, 4
    %v265 = vmax.f32 %v226, %v264
    %v266 = vrot.slane %v265, 2
    %v267 = vmax.f32 %v265, %v266
    %v268 = vrot.slane %v267, 1
    %v269 = vmax.f32 %v267, %v268
    %v270 = vrot.slane %v227, 4
    %v271 = vmax.f32 %v227, %v270
    %v272 = vrot.slane %v271, 2
    %v273 = vmax.f32 %v271, %v272
    %v274 = vrot.slane %v273, 1
    %v275 = vmax.f32 %v273, %v274
    %v276 = vadd.f32 %v233, 1.0
    %v277 = vlog2.pop %v276
    %v278 = vmul.f32 %v277, 0.6931472
    %v279 = vmul.f32 -0.5, %v233
    %v280 = vadd.f32 %v279, 1.0
    %v281 = vmul.f32 %v280, %v233
    %v282 = vand.u32 2147483647, %v233
    %vm283 = vcmp.lt.f32.partialorder %v282, 0.0004427343
    %v284 = vsel %vm283, %v281, %v278
    %v285 = vadd.f32 %v239, 1.0
    %v286 = vlog2.pop %v285
    %v287 = vmul.f32 %v286, 0.6931472
    %v288 = vmul.f32 -0.5, %v239
    %v289 = vadd.f32 %v288, 1.0
    %v290 = vmul.f32 %v289, %v239
    %v291 = vand.u32 2147483647, %v239
    %vm292 = vcmp.lt.f32.partialorder %v291, 0.0004427343
    %v293 = vsel %vm292, %v290, %v287
    %v294 = vadd.f32 %v245, 1.0
    %v295 = vlog2.pop %v294
    %v296 = vmul.f32 %v295, 0.6931472
    %v297 = vmul.f32 -0.5, %v245
    %v298 = vadd.f32 %v297, 1.0
    %v299 = vmul.f32 %v298, %v245
    %v300 = vand.u32 2147483647, %v245
    %vm301 = vcmp.lt.f32.partialorder %v300, 0.0004427343
    %v302 = vsel %vm301, %v299, %v296
    %v303 = vadd.f32 %v251, 1.0
    %v304 = vlog2.pop %v303
    %v305 = vmul.f32 %v304, 0.6931472
    %v306 = vmul.f32 -0.5, %v251
    %v307 = vadd.f32 %v306, 1.0
    %v308 = vmul.f32 %v307, %v251
    %v309 = vand.u32 2147483647, %v251
    %vm310 = vcmp.lt.f32.partialorder %v309, 0.0004427343
    %v311 = vsel %vm310, %v308, %v305
    %v312 = vadd.f32 %v257, 1.0
    %v313 = vlog2.pop %v312
    %v314 = vmul.f32 %v313, 0.6931472
    %v315 = vmul.f32 -0.5, %v257
    %v316 = vadd.f32 %v315, 1.0
    %v317 = vmul.f32 %v316, %v257
    %v318 = vand.u32 2147483647, %v257
    %vm319 = vcmp.lt.f32.partialorder %v318, 0.0004427343
    %v320 = vsel %vm319, %v317, %v314
    %v321 = vadd.f32 %v263, 1.0
    %v322 = vlog2.pop %v321
    %v323 = vmul.f32 %v322, 0.6931472
    %v324 = vmul.f32 -0.5, %v263
    %v325 = vadd.f32 %v324, 1.0
    %v326 = vmul.f32 %v325, %v263
    %v327 = vand.u32 2147483647, %v263
    %vm328 = vcmp.lt.f32.partialorder %v327, 0.0004427343
    %v329 = vsel %vm328, %v326, %v323
    %v330 = vadd.f32 %v269, 1.0
    %v331 = vlog2.pop %v330
    %v332 = vmul.f32 %v331, 0.6931472
    %v333 = vmul.f32 -0.5, %v269
    %v334 = vadd.f32 %v333, 1.0
    %v335 = vmul.f32 %v334, %v269
    %v336 = vand.u32 2147483647, %v269
    %vm337 = vcmp.lt.f32.partialorder %v336, 0.0004427343
    %v338 = vsel %vm337, %v335, %v332
    %v339 = vadd.f32 %v275, 1.0
    %v340 = vlog2.pop %v339
    %v341 = vmul.f32 %v340, 0.6931472
    %v342 = vmul.f32 -0.5, %v275
    %v343 = vadd.f32 %v342, 1.0
    %v344 = vmul.f32 %v343, %v275
    %v345 = vand.u32 2147483647, %v275
    %vm346 = vcmp.lt.f32.partialorder %v345, 0.0004427343
    %v347 = vsel %vm346, %v344, %v341
    %v356 = vcombine.low %v284, %v293
    %v357 = vcombine.low %v302, %v311
    %v359 = vunpack.c.l.s4 1983009808
    %v360 = vunpack.c.0.s8 %v359
    %v361 = vlaneseq
    %v362 = vshrl.u32 %v361, 7
    %v363 = vsub.s32 %v360, %v362
    %v364 = vrot.slane %v356, %v363
    %v366 = vunpack.c.l.s4 1983009808
    %v367 = vunpack.c.0.s8 %v366
    %v368 = vlaneseq
    %v369 = vshrl.u32 %v368, 7
    %v370 = vsub.s32 %v367, %v369
    %v371 = vrot.slane %v357, %v370
    %v372 = vcombine.low %v364, %v371
    %v373 = vcombine.low %v320, %v329
    %v374 = vcombine.low %v338, %v347
    %v376 = vunpack.c.l.s4 1983009808
    %v377 = vunpack.c.0.s8 %v376
    %v378 = vlaneseq
    %v379 = vshrl.u32 %v378, 7
    %v380 = vsub.s32 %v377, %v379
    %v381 = vrot.slane %v373, %v380
    %v383 = vunpack.c.l.s4 1983009808
    %v384 = vunpack.c.0.s8 %v383
    %v385 = vlaneseq
    %v386 = vshrl.u32 %v385, 7
    %v387 = vsub.s32 %v384, %v386
    %v388 = vrot.slane %v374, %v387
    %v389 = vcombine.low %v381, %v388
    %vm390 = vcmask 1044484
    %v391 = vsel %vm390, %v372, %v372
    %vm392 = vcmask 1046534
    %v393 = vsel %vm392, %v372, %v391
    %v394 = vrot.slane %v389, 7
    %vm395 = vcmask 1041409
    %v396 = vsel %vm395, %v394, %v393
    %vm397 = vcmask 1043459
    %v398 = vsel %vm397, %v394, %v396
    %vm399 = vcmask 1045509
    %v400 = vsel %vm399, %v394, %v398
    %vm401 = vcmask 1047559
    %v402 = vsel %vm401, %v394, %v400
    %404 = vst [vmem:[#allocation5] sm:$0xff] %v402
    // Predicated region
    $region22: #{tpu_custom_call.1} parent=1 // pred_check
      _
    $region23: #{tpu_custom_call.1} parent=1 // pred_check_branch
      %406 = sbr.rel (0) target = $region25
    $region24: #{tpu_custom_call.1} parent=1 // pred_region
      %s408 = ssub.s32 128, 128
      %409 = vsyncadd [#allocation4], %s408
      %s411 = sshll.u32 [#allocation5], 4
      %s412 = int_to_ptr.vmem [resolvable:$true] %s411
      %414 = dma.vmem_to_hbm [thread:$0]  %s412, 128, %s4, [#allocation4]
    $region25: #{tpu_custom_call.1} parent=1 // pred_fallthru
      _
    // Predicated region
    $region26: #{tpu_custom_call.1} parent=1 // pred_check
      _
    $region27: #{tpu_custom_call.1} parent=1 // pred_check_branch
      %416 = sbr.rel (0) target = $region29
    $region28: #{tpu_custom_call.1} parent=1 // pred_region
      %417 = dma.done [#allocation4], 128
    $region29: #{tpu_custom_call.1} parent=1 // pred_fallthru
      _
    %418 = vsyncpa [#allocation3], 1
    %419 = vsyncpa [#allocation4], 1

</llo_original>
